<compile_context>
chip_gen: v7x
topology: tpu7x:2x2x1
jax: 0.10.0
libtpu: 0.0.40
codegen_flags: <defaults>
</compile_context>

<pallas_src>
import functools

import jax
import jax.numpy as jnp
from jax.experimental import pallas as pl
from jax.experimental.pallas import tpu as pltpu

_LANE = 128
_MAX_ROW_TILE = 1024


def _round_up(x, m):
    return (x + m - 1) // m * m


# ---------------------------------------------------------------------------
# One-time hardware / capability queries (cached, never on the hot path).
# ---------------------------------------------------------------------------
@functools.lru_cache(maxsize=1)
def _single_buffer_weights_supported():
    """One-time probe: does this Pallas build lower pl.Buffered(buffer_count=1)
    on constant-index blocks?  Keeps the real pallas_call free of a broad
    try/except that could silently swallow unrelated lowering errors."""
    try:
        mode = pl.Buffered(buffer_count=1)
    except Exception:  # old Pallas without Buffered(1)
        return False

    def _probe_kernel(x_ref, w_ref, o_ref):
        o_ref[...] = x_ref[...] + w_ref[...]

    try:
        f = pl.pallas_call(
            _probe_kernel,
            out_shape=jax.ShapeDtypeStruct((8, _LANE), jnp.float32),
            grid=(1,),
            in_specs=[
                pl.BlockSpec((8, _LANE), lambda i: (0, 0)),
                pl.BlockSpec((8, _LANE), lambda i: (0, 0), pipeline_mode=mode),
            ],
            out_specs=pl.BlockSpec((8, _LANE), lambda i: (0, 0)),
        )
        z = jnp.zeros((8, _LANE), jnp.float32)
        jax.block_until_ready(f(z, z))
        return True
    except Exception:  # lowering rejects single-buffering
        return False


@functools.lru_cache(maxsize=1)
def _tpu_chip_info():
    """(tensorcores_per_device, physical_vmem_bytes) -- best effort."""
    kind = ""
    try:
        kind = jax.devices()[0].device_kind.lower()
    except Exception:
        pass
    # Megacore (v4/v5p) and v7x present 2 TensorCores behind one device;
    # dimension_semantics=("parallel",) shards the grid axis across them.
    two_core = any(tag in kind for tag in ("v4", "v5p", "v7", "7x"))
    num_cores = 2 if two_core else 1
    vmem_phys = 64 * 1024 * 1024  # conservative default (v7x per-TC VMEM)
    try:
        info = pltpu.get_tpu_info()
        vmem_phys = int(getattr(info, "vmem_capacity_bytes", vmem_phys))
    except Exception:
        pass
    return num_cores, vmem_phys


# ---------------------------------------------------------------------------
# Kernel
# ---------------------------------------------------------------------------
def _make_mlp_kernel(num_layers):
    """All `num_layers` linears (+ReLU between hidden layers) fused."""

    def kernel(*refs):
        x_ref = refs[0]
        o_ref = refs[-1]
        params = refs[1:-1]  # alternating (W, b) per layer

        h = x_ref[...]
        for i in range(num_layers):
            w = params[2 * i][...]        # (in_i_p, out_i_p), native dtype
            b = params[2 * i + 1][...]    # (1, out_i_p)
            # Native-dtype MXU operands, f32 accumulation.
            h = jnp.dot(h.astype(w.dtype), w,
                        preferred_element_type=jnp.float32)
            h = h + b.astype(jnp.float32)
            if i < num_layers - 1:
                h = jnp.maximum(h, 0.0)   # ReLU on hidden layers only
        o_ref[...] = h.astype(o_ref.dtype)

    return kernel


# ---------------------------------------------------------------------------
# One-time parameter preparation (padding hoisted out of the per-call path).
# ---------------------------------------------------------------------------
def prepare_mlp_params(weights, biases, *, lane=_LANE, compute_dtype=None):
    """Pad feature dims to `lane` multiples (zero-pad => numerically exact) and
    optionally cast to a compute dtype (e.g. bf16).  Call once at init.

    weights[i]: (in_i, out_i)  (transposed w.r.t. torch.nn.Linear.weight)
    biases[i]:  (out_i,) or (1, out_i)
    """
    assert len(weights) == len(biases)
    if compute_dtype is not None:
        weights = [w.astype(compute_dtype) for w in weights]
        biases = [b.astype(compute_dtype) for b in biases]

    p_in = [_round_up(w.shape[0], lane) for w in weights]
    p_out = [_round_up(w.shape[1], lane) for w in weights]
    w_p = [jnp.pad(w, ((0, pi - w.shape[0]), (0, po - w.shape[1])))
           for w, pi, po in zip(weights, p_in, p_out)]
    b_p = [jnp.pad(jnp.reshape(b, (1, -1)), ((0, 0), (0, po - b.size)))
           for b, po in zip(biases, p_out)]
    flat = tuple(a for wb in zip(w_p, b_p) for a in wb)
    weight_bytes = int(sum(a.size * a.dtype.itemsize for a in flat))

    return dict(
        num_layers=len(weights),
        params=flat,
        d_in=weights[0].shape[0],
        d_out=weights[-1].shape[1],
        d_in_p=p_in[0],
        d_out_p=p_out[-1],
        p_in=tuple(p_in),
        p_out=tuple(p_out),
        weight_bytes=weight_bytes,
        compute_dtype=jnp.dtype(w_p[0].dtype),
    )


# ---------------------------------------------------------------------------
# Tiling / VMEM budgeting
# ---------------------------------------------------------------------------
def _vmem_budget_bytes(row_tile, d_in_p, p_out, act_bytes, weight_bytes,
                       single_buf_weights):
    d_out_p = p_out[-1]
    # Double-buffered x and output tiles.
    io = 2 * row_tile * (d_in_p + d_out_p) * act_bytes
    # Live f32 intermediates (two widest layer outputs).
    outs = sorted(p_out, reverse=True)
    inter = row_tile * (outs[0] + (outs[1] if len(outs) > 1 else 0)) * 4
    # Resident weight/bias set (single- or double-buffered).
    w = weight_bytes * (1 if single_buf_weights else 2)
    return io + inter + w


def _choose_row_tile(n_rows, d_in_p, p_out, act_bytes, weight_bytes,
                     single_buf_weights, num_cores, vmem_phys, sub):
    usable = int(vmem_phys * 0.75)  # headroom for compiler internal scratch

    def fits(rt):
        return _vmem_budget_bytes(rt, d_in_p, p_out, act_bytes, weight_bytes,
                                  single_buf_weights) <= usable

    if n_rows <= num_cores * _MAX_ROW_TILE:
        # Small / DETR-sized call: one grid step per TensorCore, minimal row
        # padding (300 rows -> 304x1 single-TC, 2x152 on dual-TC chips).
        rt = _round_up(max(1, -(-n_rows // num_cores)), sub)
        rt = min(rt, _MAX_ROW_TILE)
    else:
        # Streaming regime: bigger tiles amortize the ~0.35us per-step
        # overhead and expose longer DMAs (measured ~85% of HBM roofline at
        # 512 vs ~63% at 256).
        rt = _MAX_ROW_TILE
    while rt > sub and not fits(rt):
        rt = _round_up(rt // 2, sub)
    return rt


# ---------------------------------------------------------------------------
# Wrapper
# ---------------------------------------------------------------------------
def mlp_pallas(x, prepared, *, row_tile=None, trim_output=True,
               x_buffer_count=None):
    """Apply the prepared MLP to x of shape (..., input_dim).

    trim_output=False returns the padded (rows_p, d_out_p) lane-dense slab
    (skips the wrapper-side HBM->HBM slice) for consumers that can fuse it.
    x_buffer_count lets bandwidth-starved chips (v5e) deepen input buffering.
    """
    num_layers = prepared["num_layers"]
    d_in, d_out = prepared["d_in"], prepared["d_out"]
    d_in_p, d_out_p = prepared["d_in_p"], prepared["d_out_p"]
    p_in, p_out = prepared["p_in"], prepared["p_out"]
    flat_params = prepared["params"]
    compute_dtype = prepared["compute_dtype"]

    *lead, x_d = x.shape
    assert x_d == d_in, f"last dim {x_d} != input_dim {d_in}"
    out_dtype = x.dtype

    x2 = x.reshape(-1, d_in).astype(compute_dtype)
    n_rows = x2.shape[0]
    if d_in_p != d_in:
        x2 = jnp.pad(x2, ((0, 0), (0, d_in_p - d_in)))

    act_bytes = jnp.dtype(compute_dtype).itemsize
    sub = 8 if act_bytes >= 4 else 16           # sublane multiple
    num_cores, vmem_phys = _tpu_chip_info()
    single_buf = _single_buffer_weights_supported()

    if row_tile is None:
        row_tile = _choose_row_tile(n_rows, d_in_p, p_out, act_bytes,
                                    prepared["weight_bytes"], single_buf,
                                    num_cores, vmem_phys, sub)
    else:
        row_tile = _round_up(max(sub, min(row_tile, _MAX_ROW_TILE)), sub)

    n_rows_p = _round_up(n_rows, row_tile)
    if n_rows_p != n_rows:
        x2 = jnp.pad(x2, ((0, n_rows_p - n_rows), (0, 0)))
    grid = (n_rows_p // row_tile,)

    # Explicit scoped-VMEM limit from the budget (+25% and a fixed margin),
    # never below ~default and never above physical VMEM.
    budget = _vmem_budget_bytes(row_tile, d_in_p, p_out, act_bytes,
                                prepared["weight_bytes"], single_buf)
    vmem_limit = int(min(vmem_phys,
                         max(32 << 20, int(budget * 1.25) + (4 << 20))))

    # Constant-index weight/bias blocks -> single-buffer them when supported
    # (halves weight VMEM; matters most on v7x's 64 MiB VMEM).
    w_mode = pl.Buffered(buffer_count=1) if single_buf else None
    x_mode = (pl.Buffered(buffer_count=x_buffer_count)
              if x_buffer_count is not None else None)

    in_specs = [pl.BlockSpec((row_tile, d_in_p), lambda i: (i, 0),
                             pipeline_mode=x_mode)]
    for p in flat_params:
        in_specs.append(pl.BlockSpec(p.shape, lambda i: (0, 0),
                                     pipeline_mode=w_mode))
    out_spec = pl.BlockSpec((row_tile, d_out_p), lambda i: (i, 0))

    # Advisory cost estimate so XLA schedules the custom call sanely.
    flops = 2 * n_rows_p * sum(pi * po for pi, po in zip(p_in, p_out))
    bytes_accessed = (x2.size * x2.dtype.itemsize
                      + prepared["weight_bytes"]
                      + n_rows_p * d_out_p * jnp.dtype(out_dtype).itemsize)
    cost = pl.CostEstimate(flops=int(flops), transcendentals=0,
                           bytes_accessed=int(bytes_accessed))

    out = pl.pallas_call(
        _make_mlp_kernel(num_layers),
        out_shape=jax.ShapeDtypeStruct((n_rows_p, d_out_p), out_dtype),
        grid=grid,
        in_specs=in_specs,
        out_specs=out_spec,
        compiler_params=pltpu.CompilerParams(
            dimension_semantics=("parallel",),
            vmem_limit_bytes=vmem_limit),
        cost_estimate=cost,
    )(x2, *flat_params)

    if not trim_output:
        return out  # padded, lane-dense layout for fused consumers
    out = out[:n_rows, :d_out]
    return out.reshape(*lead, d_out)


# ---------------------------------------------------------------------------
# Synthetic init + pure-JAX reference
# ---------------------------------------------------------------------------
def init_mlp_params(key, input_dim, hidden_dim, output_dim, num_layers,
                    dtype=jnp.float32):
    """Deterministic synthetic init (shapes match nn.Linear of the module)."""
    h = [hidden_dim] * (num_layers - 1)
    dims_in = [input_dim] + h
    dims_out = h + [output_dim]
    weights, biases = [], []
    for n, k in zip(dims_in, dims_out):
        key, wk, bk = jax.random.split(key, 3)
        bound = 1.0 / (n ** 0.5)  # same scale as PyTorch default uniform init
        # stored as (in, out) == torch weight.T
        w = jax.random.uniform(wk, (n, k), dtype, minval=-bound, maxval=bound)
        b = jax.random.uniform(bk, (1, k), dtype, minval=-bound, maxval=bound)
        weights.append(w)
        biases.append(b)
    return weights, biases


def mlp_reference(x, weights, biases):
    """Pure-JAX reference mirroring the PyTorch forward."""
    num_layers = len(weights)
    h = x
    for i, (w, b) in enumerate(zip(weights, biases)):
        h = h @ w + b[0]
        if i < num_layers - 1:
            h = jnp.maximum(h, 0.0)
    return h


if __name__ == "__main__":
    # Small shapes consistent with the module: (batch, seq, input_dim)
    batch, seq = 2, 8
    input_dim, hidden_dim, output_dim, num_layers = 32, 32, 8, 3

    key = jax.random.PRNGKey(0)
    key, xk = jax.random.split(key)
    x = jax.random.normal(xk, (batch, seq, input_dim), jnp.float32)

    weights, biases = init_mlp_params(
        key, input_dim, hidden_dim, output_dim, num_layers)

    # One-time padding / layout of parameters (hoisted off the per-call path).
    prepared = prepare_mlp_params(weights, biases)

    out = jax.block_until_ready(mlp_pallas(x, prepared))
    ref = mlp_reference(x, weights, biases)
    assert out.shape == (batch, seq, output_dim)
    assert jnp.allclose(out, ref, atol=2e-5, rtol=2e-5)

    # DETR-like row count (2 x 150 = 300 rows): adaptive tile gives a single
    # 304-row step on single-TC chips or 2 x 152-row steps on dual-TC chips.
    key, xk2 = jax.random.split(key)
    x_detr = jax.random.normal(xk2, (2, 150, input_dim), jnp.float32)
    out2 = jax.block_until_ready(mlp_pallas(x_detr, prepared))
    ref2 = mlp_reference(x_detr, weights, biases)
    assert out2.shape == (2, 150, output_dim)
    assert jnp.allclose(out2, ref2, atol=2e-5, rtol=2e-5)

    # bf16 fast path (optional): halves HBM traffic, full-rate MXU; f32
    # accumulation + f32 bias/ReLU retained inside the kernel.
    prepared_bf16 = prepare_mlp_params(weights, biases,
                                       compute_dtype=jnp.bfloat16)
    out3 = jax.block_until_ready(mlp_pallas(x_detr, prepared_bf16))
    assert out3.shape == (2, 150, output_dim)
    assert bool(jnp.all(jnp.isfinite(out3)))
    assert jnp.allclose(out3, ref2, atol=1e-1, rtol=1e-1)

    print("KERNEL_OK")
</pallas_src>

<mosaic_0001>
module attributes {stable_mosaic.version = 11 : i64} {
  func.func @_probe_kernel(%arg0: i32, %arg1: memref<8x128xf32, #tpu.memory_space<vmem>>, %arg2: memref<8x128xf32, #tpu.memory_space<vmem>>, %arg3: memref<8x128xf32, #tpu.memory_space<vmem>>) attributes {dimension_semantics = [#tpu.dimension_semantics<arbitrary>], iteration_bounds = array<i64: 1>, scalar_prefetch = 0 : i64, scratch_operands = 0 : i64, tpu.core_type = #tpu.core_type<tc>, window_params = [{pipeline_mode = #tpu.pipeline_mode<synchronous>, transform_indices = @transform_0, window_bounds = array<i64: 8, 128>}, {pipeline_mode = #tpu.pipeline_mode<synchronous>, transform_indices = @transform_1, window_bounds = array<i64: 8, 128>}, {pipeline_mode = #tpu.pipeline_mode<synchronous>, transform_indices = @transform_2, window_bounds = array<i64: 8, 128>}]} {
    %c0 = arith.constant 0 : index
    %c0_0 = arith.constant 0 : index
    %0 = vector.load %arg1[%c0, %c0_0] : memref<8x128xf32, #tpu.memory_space<vmem>>, vector<8x128xf32>
    %c0_1 = arith.constant 0 : index
    %c0_2 = arith.constant 0 : index
    %1 = vector.load %arg2[%c0_1, %c0_2] : memref<8x128xf32, #tpu.memory_space<vmem>>, vector<8x128xf32>
    %2 = arith.addf %0, %1 : vector<8x128xf32>
    %c0_3 = arith.constant 0 : index
    %c0_4 = arith.constant 0 : index
    %3 = vector.load %arg3[%c0_3, %c0_4] : memref<8x128xf32, #tpu.memory_space<vmem>>, vector<8x128xf32>
    tpu.vector_store %arg3[%c0_3, %c0_4], %2 {strides = array<i32>} : memref<8x128xf32, #tpu.memory_space<vmem>>, vector<8x128xf32>,
    return
  }
  func.func @transform_0(%arg0: i32) -> (i32, i32) {
    %c0_i32 = arith.constant 0 : i32
    %c0_i32_0 = arith.constant 0 : i32
    %c0_i32_1 = arith.constant 0 : i32
    return %c0_i32, %c0_i32_0 : i32, i32
  }
  func.func @transform_1(%arg0: i32) -> (i32, i32) {
    %c0_i32 = arith.constant 0 : i32
    %c0_i32_0 = arith.constant 0 : i32
    %c0_i32_1 = arith.constant 0 : i32
    return %c0_i32, %c0_i32_0 : i32, i32
  }
  func.func @transform_2(%arg0: i32) -> (i32, i32) {
    %c0_i32 = arith.constant 0 : i32
    %c0_i32_0 = arith.constant 0 : i32
    %c0_i32_1 = arith.constant 0 : i32
    return %c0_i32, %c0_i32_0 : i32, i32
  }
}

module attributes {stable_mosaic.version = 11 : i64} {
  func.func @kernel(%arg0: i32, %arg1: memref<16x128xf32, #tpu.memory_space<vmem>>, %arg2: memref<128x128xf32, #tpu.memory_space<vmem>>, %arg3: memref<1x128xf32, #tpu.memory_space<vmem>>, %arg4: memref<128x128xf32, #tpu.memory_space<vmem>>, %arg5: memref<1x128xf32, #tpu.memory_space<vmem>>, %arg6: memref<128x128xf32, #tpu.memory_space<vmem>>, %arg7: memref<1x128xf32, #tpu.memory_space<vmem>>, %arg8: memref<16x128xf32, #tpu.memory_space<vmem>>) attributes {dimension_semantics = [#tpu.dimension_semantics<parallel>], iteration_bounds = array<i64: 1>, scalar_prefetch = 0 : i64, scratch_operands = 0 : i64, tpu.core_type = #tpu.core_type<tc>, window_params = [{transform_indices = @transform_0, window_bounds = array<i64: 16, 128>}, {pipeline_mode = #tpu.pipeline_mode<synchronous>, transform_indices = @transform_1, window_bounds = array<i64: 128, 128>}, {pipeline_mode = #tpu.pipeline_mode<synchronous>, transform_indices = @transform_2, window_bounds = array<i64: 1, 128>}, {pipeline_mode = #tpu.pipeline_mode<synchronous>, transform_indices = @transform_3, window_bounds = array<i64: 128, 128>}, {pipeline_mode = #tpu.pipeline_mode<synchronous>, transform_indices = @transform_4, window_bounds = array<i64: 1, 128>}, {pipeline_mode = #tpu.pipeline_mode<synchronous>, transform_indices = @transform_5, window_bounds = array<i64: 128, 128>}, {pipeline_mode = #tpu.pipeline_mode<synchronous>, transform_indices = @transform_6, window_bounds = array<i64: 1, 128>}, {transform_indices = @transform_7, window_bounds = array<i64: 16, 128>}]} {
    %c0 = arith.constant 0 : index
    %c0_0 = arith.constant 0 : index
    %0 = vector.load %arg1[%c0, %c0_0] : memref<16x128xf32, #tpu.memory_space<vmem>>, vector<16x128xf32>
    %c0_1 = arith.constant 0 : index
    %c0_2 = arith.constant 0 : index
    %1 = vector.load %arg2[%c0_1, %c0_2] : memref<128x128xf32, #tpu.memory_space<vmem>>, vector<128x128xf32>
    %c0_3 = arith.constant 0 : index
    %c0_4 = arith.constant 0 : index
    %2 = vector.load %arg3[%c0_3, %c0_4] : memref<1x128xf32, #tpu.memory_space<vmem>>, vector<1x128xf32>
    %cst = arith.constant dense<0.000000e+00> : vector<16x128xf32>
    %3 = tpu.matmul %0, %1, %cst {dimension_numbers = #tpu.dot_dimension_numbers<[1], [0], [0], [1], [0, 0, 1, 1], [], []>} : vector<16x128xf32>, vector<128x128xf32>, vector<16x128xf32> -> vector<16x128xf32>
    %4 = vector.broadcast %2 : vector<1x128xf32> to vector<16x128xf32>
    %5 = arith.addf %3, %4 : vector<16x128xf32>
    %cst_5 = arith.constant 0.000000e+00 : f32
    %6 = vector.broadcast %cst_5 : f32 to vector<16x128xf32>
    %7 = arith.maximumf %5, %6 : vector<16x128xf32>
    %c0_6 = arith.constant 0 : index
    %c0_7 = arith.constant 0 : index
    %8 = vector.load %arg4[%c0_6, %c0_7] : memref<128x128xf32, #tpu.memory_space<vmem>>, vector<128x128xf32>
    %c0_8 = arith.constant 0 : index
    %c0_9 = arith.constant 0 : index
    %9 = vector.load %arg5[%c0_8, %c0_9] : memref<1x128xf32, #tpu.memory_space<vmem>>, vector<1x128xf32>
    %cst_10 = arith.constant dense<0.000000e+00> : vector<16x128xf32>
    %10 = tpu.matmul %7, %8, %cst_10 {dimension_numbers = #tpu.dot_dimension_numbers<[1], [0], [0], [1], [0, 0, 1, 1], [], []>} : vector<16x128xf32>, vector<128x128xf32>, vector<16x128xf32> -> vector<16x128xf32>
    %11 = vector.broadcast %9 : vector<1x128xf32> to vector<16x128xf32>
    %12 = arith.addf %10, %11 : vector<16x128xf32>
    %cst_11 = arith.constant 0.000000e+00 : f32
    %13 = vector.broadcast %cst_11 : f32 to vector<16x128xf32>
    %14 = arith.maximumf %12, %13 : vector<16x128xf32>
    %c0_12 = arith.constant 0 : index
    %c0_13 = arith.constant 0 : index
    %15 = vector.load %arg6[%c0_12, %c0_13] : memref<128x128xf32, #tpu.memory_space<vmem>>, vector<128x128xf32>
    %c0_14 = arith.constant 0 : index
    %c0_15 = arith.constant 0 : index
    %16 = vector.load %arg7[%c0_14, %c0_15] : memref<1x128xf32, #tpu.memory_space<vmem>>, vector<1x128xf32>
    %cst_16 = arith.constant dense<0.000000e+00> : vector<16x128xf32>
    %17 = tpu.matmul %14, %15, %cst_16 {dimension_numbers = #tpu.dot_dimension_numbers<[1], [0], [0], [1], [0, 0, 1, 1], [], []>} : vector<16x128xf32>, vector<128x128xf32>, vector<16x128xf32> -> vector<16x128xf32>
    %18 = vector.broadcast %16 : vector<1x128xf32> to vector<16x128xf32>
    %19 = arith.addf %17, %18 : vector<16x128xf32>
    %c0_17 = arith.constant 0 : index
    %c0_18 = arith.constant 0 : index
    %20 = vector.load %arg8[%c0_17, %c0_18] : memref<16x128xf32, #tpu.memory_space<vmem>>, vector<16x128xf32>
    tpu.vector_store %arg8[%c0_17, %c0_18], %19 {strides = array<i32>} : memref<16x128xf32, #tpu.memory_space<vmem>>, vector<16x128xf32>,
    return
  }
  func.func @transform_0(%arg0: i32) -> (i32, i32) {
    %c0_i32 = arith.constant 0 : i32
    %c0_i32_0 = arith.constant 0 : i32
    return %arg0, %c0_i32 : i32, i32
  }
  func.func @transform_1(%arg0: i32) -> (i32, i32) {
    %c0_i32 = arith.constant 0 : i32
    %c0_i32_0 = arith.constant 0 : i32
    %c0_i32_1 = arith.constant 0 : i32
    return %c0_i32, %c0_i32_0 : i32, i32
  }
  func.func @transform_2(%arg0: i32) -> (i32, i32) {
    %c0_i32 = arith.constant 0 : i32
    %c0_i32_0 = arith.constant 0 : i32
    %c0_i32_1 = arith.constant 0 : i32
    return %c0_i32, %c0_i32_0 : i32, i32
  }
  func.func @transform_3(%arg0: i32) -> (i32, i32) {
    %c0_i32 = arith.constant 0 : i32
    %c0_i32_0 = arith.constant 0 : i32
    %c0_i32_1 = arith.constant 0 : i32
    return %c0_i32, %c0_i32_0 : i32, i32
  }
  func.func @transform_4(%arg0: i32) -> (i32, i32) {
    %c0_i32 = arith.constant 0 : i32
    %c0_i32_0 = arith.constant 0 : i32
    %c0_i32_1 = arith.constant 0 : i32
    return %c0_i32, %c0_i32_0 : i32, i32
  }
  func.func @transform_5(%arg0: i32) -> (i32, i32) {
    %c0_i32 = arith.constant 0 : i32
    %c0_i32_0 = arith.constant 0 : i32
    %c0_i32_1 = arith.constant 0 : i32
    return %c0_i32, %c0_i32_0 : i32, i32
  }
  func.func @transform_6(%arg0: i32) -> (i32, i32) {
    %c0_i32 = arith.constant 0 : i32
    %c0_i32_0 = arith.constant 0 : i32
    %c0_i32_1 = arith.constant 0 : i32
    return %c0_i32, %c0_i32_0 : i32, i32
  }
  func.func @transform_7(%arg0: i32) -> (i32, i32) {
    %c0_i32 = arith.constant 0 : i32
    %c0_i32_0 = arith.constant 0 : i32
    return %arg0, %c0_i32 : i32, i32
  }
}

</mosaic_0001>

<llo_original>
// kernel: tpu_custom_call.1
$region0: #{tpu_custom_call.1}
  #allocation0 [shape = 'u32[]', space=smem, size = 0x4, offset = 0x4, fixed_abs, tag = 'smem constant byte address 0x4 - core index']
  #allocation1 [shape = 'u32[144,128]{1,0:T(1,128)}', space=vmem, size = 0x12000, scoped, tag = 'internal scratch']
  %s0 = inlined_call_operand.hbm [shape: f32[8,128], index: 0, kind: input, shape index: {}]
  %s1 = inlined_call_operand.hbm [shape: f32[8,128], index: 1, kind: input, shape index: {}]
  %s2 = inlined_call_operand.hbm [shape: f32[8,128], index: 2, kind: output, shape index: {}]
  %s3 = sld [smem:[#allocation0]]
  $region26: #{tpu_custom_call.1} parent=0
    _
  %s5 = ssub.s32 1, %s3
  %s6 = scalar_select 0, %s5, %s3
  $region1: #{tpu_custom_call.1} parent=0
    #allocation2 [shape = 'u8[4096]{0}', space=vmem, size = 0x1000, scoped, tag = 'input window, operand 0, single buffered']
    #allocation3 [shape = 's32[1]{0}', space=sflag, size = 0x4, scoped, tag = 'scoped memory for tpu_custom_call.1']
    #allocation4 [shape = 's32[1]{0}', space=sflag, size = 0x4, scoped, tag = 'scoped memory for tpu_custom_call.1']
    #allocation5 [shape = 'u8[4096]{0}', space=vmem, size = 0x1000, scoped, tag = 'input window, operand 1, single buffered']
    #allocation6 [shape = 's32[1]{0}', space=sflag, size = 0x4, scoped, tag = 'scoped memory for tpu_custom_call.1']
    #allocation7 [shape = 'u8[4096]{0}', space=vmem, size = 0x1000, scoped, tag = 'output window, operand 0, single buffered']
    %7 = vsyncpa [#allocation3], 0
    %8 = vsyncpa [#allocation6], 0
    %9 = vsyncpa [#allocation4], 0
    // Predicated region
    $region2: #{tpu_custom_call.1} parent=1 // pred_check
      _
    $region3: #{tpu_custom_call.1} parent=1 // pred_check_branch
      %11 = sbr.rel (0) target = $region5
    $region4: #{tpu_custom_call.1} parent=1 // pred_region
      %s13 = ssub.s32 128, 128
      %14 = vsyncadd [#allocation3], %s13
      %s16 = sshll.u32 [#allocation2], 4
      %s17 = int_to_ptr.vmem [resolvable:$true] %s16
      %19 = dma.hbm_to_vmem [thread:$0]  %s0, 128, %s17, [#allocation3]
    $region5: #{tpu_custom_call.1} parent=1 // pred_fallthru
      _
    // Predicated region
    $region6: #{tpu_custom_call.1} parent=1 // pred_check
      _
    $region7: #{tpu_custom_call.1} parent=1 // pred_check_branch
      %21 = sbr.rel (0) target = $region9
    $region8: #{tpu_custom_call.1} parent=1 // pred_region
      %s23 = ssub.s32 128, 128
      %24 = vsyncadd [#allocation6], %s23
      %s26 = sshll.u32 [#allocation5], 4
      %s27 = int_to_ptr.vmem [resolvable:$true] %s26
      %29 = dma.hbm_to_vmem [thread:$0]  %s1, 128, %s27, [#allocation6]
    $region9: #{tpu_custom_call.1} parent=1 // pred_fallthru
      _
    // Predicated region
    $region10: #{tpu_custom_call.1} parent=1 // pred_check
      _
    $region11: #{tpu_custom_call.1} parent=1 // pred_check_branch
      %31 = sbr.rel (0) target = $region13
    $region12: #{tpu_custom_call.1} parent=1 // pred_region
      %32 = dma.done [#allocation3], 128
    $region13: #{tpu_custom_call.1} parent=1 // pred_fallthru
      _
    // Predicated region
    $region14: #{tpu_custom_call.1} parent=1 // pred_check
      _
    $region15: #{tpu_custom_call.1} parent=1 // pred_check_branch
      %34 = sbr.rel (0) target = $region17
    $region16: #{tpu_custom_call.1} parent=1 // pred_region
      %35 = dma.done [#allocation6], 128
    $region17: #{tpu_custom_call.1} parent=1 // pred_fallthru
      _
    %v36 = vld [vmem:[#allocation2] sm:$0xff]
    %v37 = vld [vmem:[#allocation5] sm:$0xff]
    %v38 = vadd.f32 %v36, %v37
    %39 = vst [vmem:[#allocation7] sm:$0xff] %v38
    // Predicated region
    $region18: #{tpu_custom_call.1} parent=1 // pred_check
      _
    $region19: #{tpu_custom_call.1} parent=1 // pred_check_branch
      %41 = sbr.rel (0) target = $region21
    $region20: #{tpu_custom_call.1} parent=1 // pred_region
      %s43 = ssub.s32 128, 128
      %44 = vsyncadd [#allocation4], %s43
      %s46 = sshll.u32 [#allocation7], 4
      %s47 = int_to_ptr.vmem [resolvable:$true] %s46
      %49 = dma.vmem_to_hbm [thread:$0]  %s47, 128, %s2, [#allocation4]
    $region21: #{tpu_custom_call.1} parent=1 // pred_fallthru
      _
    // Predicated region
    $region22: #{tpu_custom_call.1} parent=1 // pred_check
      _
    $region23: #{tpu_custom_call.1} parent=1 // pred_check_branch
      %51 = sbr.rel (0) target = $region25
    $region24: #{tpu_custom_call.1} parent=1 // pred_region
      %52 = dma.done [#allocation4], 128
    $region25: #{tpu_custom_call.1} parent=1 // pred_fallthru
      _
    %53 = vsyncpa [#allocation3], 1
    %54 = vsyncpa [#allocation6], 1
    %55 = vsyncpa [#allocation4], 1

// kernel: tpu_custom_call.1
$region0: #{tpu_custom_call.1}
  #allocation0 [shape = 'u32[]', space=smem, size = 0x4, offset = 0x4, fixed_abs, tag = 'smem constant byte address 0x4 - core index']
  #allocation1 [shape = 'u32[144,128]{1,0:T(1,128)}', space=vmem, size = 0x12000, scoped, tag = 'internal scratch']
  %s0 = inlined_call_operand.hbm [shape: f32[16,128], index: 0, kind: input, shape index: {}]
  %s1 = inlined_call_operand.hbm [shape: f32[128,128], index: 1, kind: input, shape index: {}]
  %s2 = inlined_call_operand.vmem [shape: f32[1,128], index: 2, kind: input, shape index: {}]
  %s3 = inlined_call_operand.hbm [shape: f32[128,128], index: 3, kind: input, shape index: {}]
  %s4 = inlined_call_operand.vmem [shape: f32[1,128], index: 4, kind: input, shape index: {}]
  %s5 = inlined_call_operand.hbm [shape: f32[128,128], index: 5, kind: input, shape index: {}]
  %s6 = inlined_call_operand.vmem [shape: f32[1,128], index: 6, kind: input, shape index: {}]
  %s7 = inlined_call_operand.hbm [shape: f32[16,128], index: 7, kind: output, shape index: {}]
  %s8 = sld [smem:[#allocation0]]
  $region54: #{tpu_custom_call.1} parent=0
    _
  %s10 = ssub.s32 1, %s8
  %s11 = scalar_select 0, %s10, %s8
  $region1: #{tpu_custom_call.1} parent=0
    #allocation2 [shape = 'u8[8192]{0}', space=vmem, size = 0x2000, scoped, tag = 'input window, operand 0, single buffered']
    #allocation3 [shape = 's32[1]{0}', space=sflag, size = 0x4, scoped, tag = 'scoped memory for tpu_custom_call.1']
    #allocation4 [shape = 's32[1]{0}', space=sflag, size = 0x4, scoped, tag = 'scoped memory for tpu_custom_call.1']
    #allocation5 [shape = 'u8[65536]{0}', space=vmem, size = 0x10000, scoped, tag = 'input window, operand 1, single buffered']
    #allocation6 [shape = 's32[1]{0}', space=sflag, size = 0x4, scoped, tag = 'scoped memory for tpu_custom_call.1']
    #allocation7 [shape = 'u8[65536]{0}', space=vmem, size = 0x10000, scoped, tag = 'input window, operand 3, single buffered']
    #allocation8 [shape = 'u8[65536]{0}', space=vmem, size = 0x10000, scoped, tag = 'input window, operand 5, single buffered']
    #allocation9 [shape = 's32[1]{0}', space=sflag, size = 0x4, scoped, tag = 'scoped memory for tpu_custom_call.1']
    #allocation10 [shape = 'u8[8192]{0}', space=vmem, size = 0x2000, scoped, tag = 'output window, operand 0, single buffered']
    %12 = vsyncpa [#allocation3], 0
    %13 = vsyncpa [#allocation6], 0
    %14 = vsyncpa [#allocation9], 0
    %15 = vsyncpa [#allocation4], 0
    // Predicated region
    $region2: #{tpu_custom_call.1} parent=1 // pred_check
      _
    $region3: #{tpu_custom_call.1} parent=1 // pred_check_branch
      %17 = sbr.rel (0) target = $region5
    $region4: #{tpu_custom_call.1} parent=1 // pred_region
      %s19 = ssub.s32 256, 256
      %20 = vsyncadd [#allocation3], %s19
      %s21 = sshll.u32 [#allocation2], 4
      %s22 = int_to_ptr.vmem [resolvable:$true] %s21
      %27 = dma.hbm_to_vmem [thread:$0]  %s0, 256, %s22, [#allocation3], 128, 128, 8
    $region5: #{tpu_custom_call.1} parent=1 // pred_fallthru
      _
    // Predicated region
    $region6: #{tpu_custom_call.1} parent=1 // pred_check
      _
    $region7: #{tpu_custom_call.1} parent=1 // pred_check_branch
      %29 = sbr.rel (0) target = $region9
    $region8: #{tpu_custom_call.1} parent=1 // pred_region
      %s31 = ssub.s32 2048, 2048
      %32 = vsyncadd [#allocation6], %s31
      %s33 = sshll.u32 [#allocation5], 4
      %s34 = int_to_ptr.vmem [resolvable:$true] %s33
      %39 = dma.hbm_to_vmem [thread:$0]  %s1, 2048, %s34, [#allocation6], 128, 128, 8
    $region9: #{tpu_custom_call.1} parent=1 // pred_fallthru
      _
    // Predicated region
    $region10: #{tpu_custom_call.1} parent=1 // pred_check
      _
    $region11: #{tpu_custom_call.1} parent=1 // pred_check_branch
      %41 = sbr.rel (0) target = $region13
    $region12: #{tpu_custom_call.1} parent=1 // pred_region
      _
    $region13: #{tpu_custom_call.1} parent=1 // pred_fallthru
      _
    // Predicated region
    $region14: #{tpu_custom_call.1} parent=1 // pred_check
      _
    $region15: #{tpu_custom_call.1} parent=1 // pred_check_branch
      %43 = sbr.rel (0) target = $region17
    $region16: #{tpu_custom_call.1} parent=1 // pred_region
      %s45 = ssub.s32 2048, 2048
      %46 = vsyncadd [#allocation6], %s45
      %s47 = sshll.u32 [#allocation7], 4
      %s48 = int_to_ptr.vmem [resolvable:$true] %s47
      %53 = dma.hbm_to_vmem [thread:$0]  %s3, 2048, %s48, [#allocation6], 128, 128, 8
    $region17: #{tpu_custom_call.1} parent=1 // pred_fallthru
      _
    // Predicated region
    $region18: #{tpu_custom_call.1} parent=1 // pred_check
      _
    $region19: #{tpu_custom_call.1} parent=1 // pred_check_branch
      %55 = sbr.rel (0) target = $region21
    $region20: #{tpu_custom_call.1} parent=1 // pred_region
      _
    $region21: #{tpu_custom_call.1} parent=1 // pred_fallthru
      _
    // Predicated region
    $region22: #{tpu_custom_call.1} parent=1 // pred_check
      _
    $region23: #{tpu_custom_call.1} parent=1 // pred_check_branch
      %57 = sbr.rel (0) target = $region25
    $region24: #{tpu_custom_call.1} parent=1 // pred_region
      %s59 = ssub.s32 2048, 2048
      %60 = vsyncadd [#allocation9], %s59
      %s61 = sshll.u32 [#allocation8], 4
      %s62 = int_to_ptr.vmem [resolvable:$true] %s61
      %67 = dma.hbm_to_vmem [thread:$0]  %s5, 2048, %s62, [#allocation9], 128, 128, 8
    $region25: #{tpu_custom_call.1} parent=1 // pred_fallthru
      _
    // Predicated region
    $region26: #{tpu_custom_call.1} parent=1 // pred_check
      _
    $region27: #{tpu_custom_call.1} parent=1 // pred_check_branch
      %69 = sbr.rel (0) target = $region29
    $region28: #{tpu_custom_call.1} parent=1 // pred_region
      _
    $region29: #{tpu_custom_call.1} parent=1 // pred_fallthru
      _
    // Predicated region
    $region30: #{tpu_custom_call.1} parent=1 // pred_check
      _
    $region31: #{tpu_custom_call.1} parent=1 // pred_check_branch
      %71 = sbr.rel (0) target = $region33
    $region32: #{tpu_custom_call.1} parent=1 // pred_region
      %72 = dma.done [#allocation3], 256
    $region33: #{tpu_custom_call.1} parent=1 // pred_fallthru
      _
    // Predicated region
    $region34: #{tpu_custom_call.1} parent=1 // pred_check
      _
    $region35: #{tpu_custom_call.1} parent=1 // pred_check_branch
      %74 = sbr.rel (0) target = $region37
    $region36: #{tpu_custom_call.1} parent=1 // pred_region
      %75 = dma.done [#allocation6], 2048
    $region37: #{tpu_custom_call.1} parent=1 // pred_fallthru
      _
    // Predicated region
    $region38: #{tpu_custom_call.1} parent=1 // pred_check
      _
    $region39: #{tpu_custom_call.1} parent=1 // pred_check_branch
      %77 = sbr.rel (0) target = $region41
    $region40: #{tpu_custom_call.1} parent=1 // pred_region
      %78 = dma.done [#allocation6], 2048
    $region41: #{tpu_custom_call.1} parent=1 // pred_fallthru
      _
    // Predicated region
    $region42: #{tpu_custom_call.1} parent=1 // pred_check
      _
    $region43: #{tpu_custom_call.1} parent=1 // pred_check_branch
      %80 = sbr.rel (0) target = $region45
    $region44: #{tpu_custom_call.1} parent=1 // pred_region
      %81 = dma.done [#allocation9], 2048
    $region45: #{tpu_custom_call.1} parent=1 // pred_fallthru
      _
    %v82 = vld [vmem:[#allocation2] sm:$0xff]
    %v83 = vld [vmem:[#allocation2 + $0x8] sm:$0xff]
    %v84 = vld [vmem:[#allocation5] sm:$0xff]
    %v85 = vld [vmem:[#allocation5 + $0x8] sm:$0xff]
    %v86 = vld [vmem:[#allocation5 + $0x10] sm:$0xff]
    %v87 = vld [vmem:[#allocation5 + $0x18] sm:$0xff]
    %v88 = vld [vmem:[#allocation5 + $0x20] sm:$0xff]
    %v89 = vld [vmem:[#allocation5 + $0x28] sm:$0xff]
    %v90 = vld [vmem:[#allocation5 + $0x30] sm:$0xff]
    %v91 = vld [vmem:[#allocation5 + $0x38] sm:$0xff]
    %v92 = vld [vmem:[#allocation5 + $0x40] sm:$0xff]
    %v93 = vld [vmem:[#allocation5 + $0x48] sm:$0xff]
    %v94 = vld [vmem:[#allocation5 + $0x50] sm:$0xff]
    %v95 = vld [vmem:[#allocation5 + $0x58] sm:$0xff]
    %v96 = vld [vmem:[#allocation5 + $0x60] sm:$0xff]
    %v97 = vld [vmem:[#allocation5 + $0x68] sm:$0xff]
    %v98 = vld [vmem:[#allocation5 + $0x70] sm:$0xff]
    %v99 = vld [vmem:[#allocation5 + $0x78] sm:$0xff]
    %v100 = vld [vmem:[%s2] sm:$0x1]
    %v102 = vlaneseq
    %v103 = vshrl.u32 %v102, 7
    %v104 = vsub.s32 0, %v103
    %v105 = vrot.slane %v100, %v104
    %107 = vmatprep.subr.mxu0 0.0
    %108 = vmatpush1.msra.mxu0 %v84
    %109 = vmatprep.subr.mxu0 0.0
    %110 = vmatpush1.msra.mxu0 %v85
    %111 = vmatprep.subr.mxu0 0.0
    %112 = vmatpush1.msra.mxu0 %v86
    %113 = vmatprep.subr.mxu0 0.0
    %114 = vmatpush1.msra.mxu0 %v87
    %115 = vmatprep.subr.mxu0 0.0
    %116 = vmatpush1.msra.mxu0 %v88
    %117 = vmatprep.subr.mxu0 0.0
    %118 = vmatpush1.msra.mxu0 %v89
    %119 = vmatprep.subr.mxu0 0.0
    %120 = vmatpush1.msra.mxu0 %v90
    %121 = vmatprep.subr.mxu0 0.0
    %122 = vmatpush1.msra.mxu0 %v91
    %123 = vmatprep.subr.mxu0 0.0
    %124 = vmatpush1.msra.mxu0 %v92
    %125 = vmatprep.subr.mxu0 0.0
    %126 = vmatpush1.msra.mxu0 %v93
    %127 = vmatprep.subr.mxu0 0.0
    %128 = vmatpush1.msra.mxu0 %v94
    %129 = vmatprep.subr.mxu0 0.0
    %130 = vmatpush1.msra.mxu0 %v95
    %131 = vmatprep.subr.mxu0 0.0
    %132 = vmatpush1.msra.mxu0 %v96
    %133 = vmatprep.subr.mxu0 0.0
    %134 = vmatpush1.msra.mxu0 %v97
    %135 = vmatprep.subr.mxu0 0.0
    %136 = vmatpush1.msra.mxu0 %v98
    %137 = vmatprep.subr.mxu0 0.0
    %138 = vmatpush1.msra.mxu0 %v99
    %139 = vmatprep.subr.mxu0 0.0
    %140 = vmatpush1.msra.mxu0 0.0
    %141 = vmatprep.subr.mxu0 0.0
    %142 = vmatpush1.msra.mxu0 0.0
    %143 = vmatprep.subr.mxu0 0.0
    %144 = vmatpush1.msra.mxu0 0.0
    %145 = vmatprep.subr.mxu0 0.0
    %146 = vmatpush1.msra.mxu0 0.0
    %147 = vmatprep.subr.mxu0 0.0
    %148 = vmatpush1.msra.mxu0 0.0
    %149 = vmatprep.subr.mxu0 0.0
    %150 = vmatpush1.msra.mxu0 0.0
    %151 = vmatprep.subr.mxu0 0.0
    %152 = vmatpush1.msra.mxu0 0.0
    %153 = vmatprep.subr.mxu0 0.0
    %154 = vmatpush1.msra.mxu0 0.0
    %155 = vmatprep.subr.mxu0 0.0
    %156 = vmatpush1.msra.mxu0 0.0
    %157 = vmatprep.subr.mxu0 0.0
    %158 = vmatpush1.msra.mxu0 0.0
    %159 = vmatprep.subr.mxu0 0.0
    %160 = vmatpush1.msra.mxu0 0.0
    %161 = vmatprep.subr.mxu0 0.0
    %162 = vmatpush1.msra.mxu0 0.0
    %163 = vmatprep.subr.mxu0 0.0
    %164 = vmatpush1.msra.mxu0 0.0
    %165 = vmatprep.subr.mxu0 0.0
    %166 = vmatpush1.msra.mxu0 0.0
    %167 = vmatprep.subr.mxu0 0.0
    %168 = vmatpush1.msra.mxu0 0.0
    %169 = vmatprep.subr.mxu0 0.0
    %170 = vmatpush1.msra.mxu0 0.0
    %171 = vmatprep.mubr.f32.mxu0 0.0
    %172 = vmatmul.mubr.f32.gmra.mrb[0].mxu0 %v82
    %v173 = vpop.f32.mrb[0].mxu0
    %v174 = vadd.f32 %v105, %v173
    %v175 = vpop.f32.mrb[0].mxu0
    %176 = vmatprep.mubr.f32.mxu0 0.0
    %177 = vmatmul.mubr.f32.gmra.mrb[0].mxu0 %v83
    %v178 = vpop.f32.mrb[0].mxu0
    %v179 = vadd.f32 %v105, %v178
    %v180 = vpop.f32.mrb[0].mxu0
    %181 = vdwg.mxu0
    %v182 = vmax.f32 %v174, 0.0
    %v183 = vmax.f32 %v179, 0.0
    %v184 = vld [vmem:[#allocation7] sm:$0xff]
    %v185 = vld [vmem:[#allocation7 + $0x8] sm:$0xff]
    %v186 = vld [vmem:[#allocation7 + $0x10] sm:$0xff]
    %v187 = vld [vmem:[#allocation7 + $0x18] sm:$0xff]
    %v188 = vld [vmem:[#allocation7 + $0x20] sm:$0xff]
    %v189 = vld [vmem:[#allocation7 + $0x28] sm:$0xff]
    %v190 = vld [vmem:[#allocation7 + $0x30] sm:$0xff]
    %v191 = vld [vmem:[#allocation7 + $0x38] sm:$0xff]
    %v192 = vld [vmem:[#allocation7 + $0x40] sm:$0xff]
    %v193 = vld [vmem:[#allocation7 + $0x48] sm:$0xff]
    %v194 = vld [vmem:[#allocation7 + $0x50] sm:$0xff]
    %v195 = vld [vmem:[#allocation7 + $0x58] sm:$0xff]
    %v196 = vld [vmem:[#allocation7 + $0x60] sm:$0xff]
    %v197 = vld [vmem:[#allocation7 + $0x68] sm:$0xff]
    %v198 = vld [vmem:[#allocation7 + $0x70] sm:$0xff]
    %v199 = vld [vmem:[#allocation7 + $0x78] sm:$0xff]
    %v200 = vld [vmem:[%s4] sm:$0x1]
    %v202 = vlaneseq
    %v203 = vshrl.u32 %v202, 7
    %v204 = vsub.s32 0, %v203
    %v205 = vrot.slane %v200, %v204
    %207 = vmatprep.subr.mxu0 0.0
    %208 = vmatpush1.msra.mxu0 %v184
    %209 = vmatprep.subr.mxu0 0.0
    %210 = vmatpush1.msra.mxu0 %v185
    %211 = vmatprep.subr.mxu0 0.0
    %212 = vmatpush1.msra.mxu0 %v186
    %213 = vmatprep.subr.mxu0 0.0
    %214 = vmatpush1.msra.mxu0 %v187
    %215 = vmatprep.subr.mxu0 0.0
    %216 = vmatpush1.msra.mxu0 %v188
    %217 = vmatprep.subr.mxu0 0.0
    %218 = vmatpush1.msra.mxu0 %v189
    %219 = vmatprep.subr.mxu0 0.0
    %220 = vmatpush1.msra.mxu0 %v190
    %221 = vmatprep.subr.mxu0 0.0
    %222 = vmatpush1.msra.mxu0 %v191
    %223 = vmatprep.subr.mxu0 0.0
    %224 = vmatpush1.msra.mxu0 %v192
    %225 = vmatprep.subr.mxu0 0.0
    %226 = vmatpush1.msra.mxu0 %v193
    %227 = vmatprep.subr.mxu0 0.0
    %228 = vmatpush1.msra.mxu0 %v194
    %229 = vmatprep.subr.mxu0 0.0
    %230 = vmatpush1.msra.mxu0 %v195
    %231 = vmatprep.subr.mxu0 0.0
    %232 = vmatpush1.msra.mxu0 %v196
    %233 = vmatprep.subr.mxu0 0.0
    %234 = vmatpush1.msra.mxu0 %v197
    %235 = vmatprep.subr.mxu0 0.0
    %236 = vmatpush1.msra.mxu0 %v198
    %237 = vmatprep.subr.mxu0 0.0
    %238 = vmatpush1.msra.mxu0 %v199
    %239 = vmatprep.subr.mxu0 0.0
    %240 = vmatpush1.msra.mxu0 0.0
    %241 = vmatprep.subr.mxu0 0.0
    %242 = vmatpush1.msra.mxu0 0.0
    %243 = vmatprep.subr.mxu0 0.0
    %244 = vmatpush1.msra.mxu0 0.0
    %245 = vmatprep.subr.mxu0 0.0
    %246 = vmatpush1.msra.mxu0 0.0
    %247 = vmatprep.subr.mxu0 0.0
    %248 = vmatpush1.msra.mxu0 0.0
    %249 = vmatprep.subr.mxu0 0.0
    %250 = vmatpush1.msra.mxu0 0.0
    %251 = vmatprep.subr.mxu0 0.0
    %252 = vmatpush1.msra.mxu0 0.0
    %253 = vmatprep.subr.mxu0 0.0
    %254 = vmatpush1.msra.mxu0 0.0
    %255 = vmatprep.subr.mxu0 0.0
    %256 = vmatpush1.msra.mxu0 0.0
    %257 = vmatprep.subr.mxu0 0.0
    %258 = vmatpush1.msra.mxu0 0.0
    %259 = vmatprep.subr.mxu0 0.0
    %260 = vmatpush1.msra.mxu0 0.0
    %261 = vmatprep.subr.mxu0 0.0
    %262 = vmatpush1.msra.mxu0 0.0
    %263 = vmatprep.subr.mxu0 0.0
    %264 = vmatpush1.msra.mxu0 0.0
    %265 = vmatprep.subr.mxu0 0.0
    %266 = vmatpush1.msra.mxu0 0.0
    %267 = vmatprep.subr.mxu0 0.0
    %268 = vmatpush1.msra.mxu0 0.0
    %269 = vmatprep.subr.mxu0 0.0
    %270 = vmatpush1.msra.mxu0 0.0
    %271 = vmatprep.mubr.f32.mxu0 0.0
    %272 = vmatmul.mubr.f32.gmra.mrb[0].mxu0 %v182
    %v273 = vpop.f32.mrb[0].mxu0
    %v274 = vadd.f32 %v205, %v273
    %v275 = vpop.f32.mrb[0].mxu0
    %276 = vmatprep.mubr.f32.mxu0 0.0
    %277 = vmatmul.mubr.f32.gmra.mrb[0].mxu0 %v183
    %v278 = vpop.f32.mrb[0].mxu0
    %v279 = vadd.f32 %v205, %v278
    %v280 = vpop.f32.mrb[0].mxu0
    %281 = vdwg.mxu0
    %v282 = vmax.f32 %v274, 0.0
    %v283 = vmax.f32 %v279, 0.0
    %v284 = vld [vmem:[#allocation8] sm:$0xff]
    %v285 = vld [vmem:[#allocation8 + $0x8] sm:$0xff]
    %v286 = vld [vmem:[#allocation8 + $0x10] sm:$0xff]
    %v287 = vld [vmem:[#allocation8 + $0x18] sm:$0xff]
    %v288 = vld [vmem:[#allocation8 + $0x20] sm:$0xff]
    %v289 = vld [vmem:[#allocation8 + $0x28] sm:$0xff]
    %v290 = vld [vmem:[#allocation8 + $0x30] sm:$0xff]
    %v291 = vld [vmem:[#allocation8 + $0x38] sm:$0xff]
    %v292 = vld [vmem:[#allocation8 + $0x40] sm:$0xff]
    %v293 = vld [vmem:[#allocation8 + $0x48] sm:$0xff]
    %v294 = vld [vmem:[#allocation8 + $0x50] sm:$0xff]
    %v295 = vld [vmem:[#allocation8 + $0x58] sm:$0xff]
    %v296 = vld [vmem:[#allocation8 + $0x60] sm:$0xff]
    %v297 = vld [vmem:[#allocation8 + $0x68] sm:$0xff]
    %v298 = vld [vmem:[#allocation8 + $0x70] sm:$0xff]
    %v299 = vld [vmem:[#allocation8 + $0x78] sm:$0xff]
    %v300 = vld [vmem:[%s6] sm:$0x1]
    %v302 = vlaneseq
    %v303 = vshrl.u32 %v302, 7
    %v304 = vsub.s32 0, %v303
    %v305 = vrot.slane %v300, %v304
    %307 = vmatprep.subr.mxu0 0.0
    %308 = vmatpush1.msra.mxu0 %v284
    %309 = vmatprep.subr.mxu0 0.0
    %310 = vmatpush1.msra.mxu0 %v285
    %311 = vmatprep.subr.mxu0 0.0
    %312 = vmatpush1.msra.mxu0 %v286
    %313 = vmatprep.subr.mxu0 0.0
    %314 = vmatpush1.msra.mxu0 %v287
    %315 = vmatprep.subr.mxu0 0.0
    %316 = vmatpush1.msra.mxu0 %v288
    %317 = vmatprep.subr.mxu0 0.0
    %318 = vmatpush1.msra.mxu0 %v289
    %319 = vmatprep.subr.mxu0 0.0
    %320 = vmatpush1.msra.mxu0 %v290
    %321 = vmatprep.subr.mxu0 0.0
    %322 = vmatpush1.msra.mxu0 %v291
    %323 = vmatprep.subr.mxu0 0.0
    %324 = vmatpush1.msra.mxu0 %v292
    %325 = vmatprep.subr.mxu0 0.0
    %326 = vmatpush1.msra.mxu0 %v293
    %327 = vmatprep.subr.mxu0 0.0
    %328 = vmatpush1.msra.mxu0 %v294
    %329 = vmatprep.subr.mxu0 0.0
    %330 = vmatpush1.msra.mxu0 %v295
    %331 = vmatprep.subr.mxu0 0.0
    %332 = vmatpush1.msra.mxu0 %v296
    %333 = vmatprep.subr.mxu0 0.0
    %334 = vmatpush1.msra.mxu0 %v297
    %335 = vmatprep.subr.mxu0 0.0
    %336 = vmatpush1.msra.mxu0 %v298
    %337 = vmatprep.subr.mxu0 0.0
    %338 = vmatpush1.msra.mxu0 %v299
    %339 = vmatprep.subr.mxu0 0.0
    %340 = vmatpush1.msra.mxu0 0.0
    %341 = vmatprep.subr.mxu0 0.0
    %342 = vmatpush1.msra.mxu0 0.0
    %343 = vmatprep.subr.mxu0 0.0
    %344 = vmatpush1.msra.mxu0 0.0
    %345 = vmatprep.subr.mxu0 0.0
    %346 = vmatpush1.msra.mxu0 0.0
    %347 = vmatprep.subr.mxu0 0.0
    %348 = vmatpush1.msra.mxu0 0.0
    %349 = vmatprep.subr.mxu0 0.0
    %350 = vmatpush1.msra.mxu0 0.0
    %351 = vmatprep.subr.mxu0 0.0
    %352 = vmatpush1.msra.mxu0 0.0
    %353 = vmatprep.subr.mxu0 0.0
    %354 = vmatpush1.msra.mxu0 0.0
    %355 = vmatprep.subr.mxu0 0.0
    %356 = vmatpush1.msra.mxu0 0.0
    %357 = vmatprep.subr.mxu0 0.0
    %358 = vmatpush1.msra.mxu0 0.0
    %359 = vmatprep.subr.mxu0 0.0
    %360 = vmatpush1.msra.mxu0 0.0
    %361 = vmatprep.subr.mxu0 0.0
    %362 = vmatpush1.msra.mxu0 0.0
    %363 = vmatprep.subr.mxu0 0.0
    %364 = vmatpush1.msra.mxu0 0.0
    %365 = vmatprep.subr.mxu0 0.0
    %366 = vmatpush1.msra.mxu0 0.0
    %367 = vmatprep.subr.mxu0 0.0
    %368 = vmatpush1.msra.mxu0 0.0
    %369 = vmatprep.subr.mxu0 0.0
    %370 = vmatpush1.msra.mxu0 0.0
    %371 = vmatprep.mubr.f32.mxu0 0.0
    %372 = vmatmul.mubr.f32.gmra.mrb[0].mxu0 %v282
    %v373 = vpop.f32.mrb[0].mxu0
    %v374 = vadd.f32 %v305, %v373
    %v375 = vpop.f32.mrb[0].mxu0
    %376 = vmatprep.mubr.f32.mxu0 0.0
    %377 = vmatmul.mubr.f32.gmra.mrb[0].mxu0 %v283
    %v378 = vpop.f32.mrb[0].mxu0
    %v379 = vadd.f32 %v305, %v378
    %v380 = vpop.f32.mrb[0].mxu0
    %381 = vdwg.mxu0
    %382 = vst [vmem:[#allocation10] sm:$0xff] %v374
    %383 = vst [vmem:[#allocation10 + $0x8] sm:$0xff] %v379
    // Predicated region
    $region46: #{tpu_custom_call.1} parent=1 // pred_check
      _
    $region47: #{tpu_custom_call.1} parent=1 // pred_check_branch
      %385 = sbr.rel (0) target = $region49
    $region48: #{tpu_custom_call.1} parent=1 // pred_region
      %s387 = ssub.s32 256, 256
      %388 = vsyncadd [#allocation4], %s387
      %s389 = sshll.u32 [#allocation10], 4
      %s390 = int_to_ptr.vmem [resolvable:$true] %s389
      %395 = dma.vmem_to_hbm [thread:$0]  %s390, 256, %s7, [#allocation4], 128, 128, 8
    $region49: #{tpu_custom_call.1} parent=1 // pred_fallthru
      _
    // Predicated region
    $region50: #{tpu_custom_call.1} parent=1 // pred_check
      _
    $region51: #{tpu_custom_call.1} parent=1 // pred_check_branch
      %397 = sbr.rel (0) target = $region53
    $region52: #{tpu_custom_call.1} parent=1 // pred_region
      %398 = dma.done [#allocation4], 256
    $region53: #{tpu_custom_call.1} parent=1 // pred_fallthru
      _
    %399 = vsyncpa [#allocation3], 1
    %400 = vsyncpa [#allocation6], 1
    %401 = vsyncpa [#allocation9], 1
    %402 = vsyncpa [#allocation4], 1

</llo_original>
